<compile_context>
chip_gen: v7x
topology: tpu7x:2x2x1
jax: 0.10.0
libtpu: 0.0.40
codegen_flags: <defaults>
</compile_context>

<pallas_src>
import jax
import jax.numpy as jnp
from jax import lax
from jax.experimental import pallas as pl
from jax.experimental.pallas import tpu as pltpu

# ----- synthetic "RoboticEnv" / hyper-param dims (small, deterministic) -----
STATE_DIM = 12
ACTION_DIM = 4
CRITIC_HIDDEN = 64                       # Hyper_Param['critic_num_neurons'] = [64]
LANE = 128                               # padded feature width (one lane tile)
BATCH = 2

# weight-slab row offsets (all 8-aligned; slab is (192, 128) f32)
R_W1S = 0                                # rows  0:12   state  encoder L1 (12 -> 64)
R_W1A = 16                               # rows 16:20   action encoder L1 ( 4 -> 32)
R_W2 = 24                                # rows 24:120  fused L2 block-diag (96 -> 64)
R_W3 = 120                               # rows 120:184 q hidden (64 -> 64)
R_W4T = 184                              # rows 184:192 q output, stored transposed (1 x 64)
W_ROWS = 192


def _round_up(n, m):
    return ((n + m - 1) // m) * m


def _batch_tiling(B):
    """Pick (batch-tile rows, padded batch).

    * tiles are multiples of 128 rows (q is emitted lane-dense / transposed),
    * tiles grow up to 2048 rows so the ~0.35 us per-grid-step overhead
      amortizes for big replay-buffer batches,
    * the grid keeps >= 2 steps whenever B > 128 so the "parallel" batch axis
      actually spans both TensorCores on v7x.
    """
    n_blk = -(-B // 128)                  # number of 128-row blocks after padding
    steps = -(-n_blk // 16)               # cap tiles at 16 * 128 = 2048 rows
    if n_blk >= 2:
        steps = max(steps, 2)
    bb = (-(-n_blk // steps)) * 128
    Bp = _round_up(B, bb)
    return bb, Bp


# --------------------------------------------------------------------------
# Kernel: 3 fused Linear(+ReLU) layers on zero-padded 128-wide features plus a
# transposed output Linear that puts q on the lane axis.
#   layer 1: block-diag [w1s | w1a]   (12+4 -> 96, padded to 128) + ReLU
#   layer 2: block-diag [w2s | w2a]   (96   -> 64, padded to 128) + ReLU == emb
#   layer 3: q_estimator hidden       (64   -> 64, padded)        + ReLU
#   layer 4: q_estimator output       (64   -> 1), computed as (8,64)x(bb,64)^T
#            so the result is (1, bb) with the batch on lanes.
# Zero-padded rows/cols contribute exactly 0 (and ReLU(0)=0), so the math is
# the same sums as the unfused reference.
# --------------------------------------------------------------------------
def critic_kernel(x_ref, a_ref, w_ref, b_ref, out_ref):
    xv = x_ref[...]                                                   # (bb, 12)
    av = a_ref[...]                                                   # (bb, 4)

    # layer 1: fused state/action first Linear + ReLU (concat-free: two dots)
    h = (jnp.dot(xv, w_ref[R_W1S:R_W1S + STATE_DIM, :],
                 preferred_element_type=jnp.float32)
         + jnp.dot(av, w_ref[R_W1A:R_W1A + ACTION_DIM, :],
                   preferred_element_type=jnp.float32)
         + b_ref[0:1, :])
    h = jnp.maximum(h, 0.0)                                           # lanes 96:128 == 0

    # layer 2: fused second Linear + ReLU (K = 96 nonzero rows) -> emb in lanes [0:64]
    h = jnp.dot(h[:, :96], w_ref[R_W2:R_W2 + 96, :],
                preferred_element_type=jnp.float32) + b_ref[1:2, :]
    h = jnp.maximum(h, 0.0)                                           # lanes 64:128 == 0

    # layer 3: q_estimator hidden Linear + ReLU (K = 64)
    h = jnp.dot(h[:, :64], w_ref[R_W3:R_W3 + 64, :],
                preferred_element_type=jnp.float32) + b_ref[2:3, :]
    h = jnp.maximum(h, 0.0)

    # layer 4: q output computed transposed so the batch lands on the lane axis.
    #   (8, 64) contract-on-dim-1 (bb, 64) -> (8, bb); only row 0 is the real q.
    qT = lax.dot_general(w_ref[R_W4T:R_W4T + 8, 0:64], h[:, :64],
                         dimension_numbers=(((1,), (1,)), ((), ())),
                         preferred_element_type=jnp.float32)
    out_ref[...] = (qT[0:1, :] + b_ref[3:4, 0:1]).astype(out_ref.dtype)


@jax.jit
def critic_forward(x, a, w_slab, b_slab):
    B = x.shape[0]
    bb, Bp = _batch_tiling(B)
    if Bp != B:
        x = jnp.pad(x, ((0, Bp - B), (0, 0)))
        a = jnp.pad(a, ((0, Bp - B), (0, 0)))

    qT = pl.pallas_call(
        critic_kernel,
        out_shape=jax.ShapeDtypeStruct((1, Bp), jnp.float32),         # lane-dense q
        grid=(Bp // bb,),
        in_specs=[
            pl.BlockSpec((bb, STATE_DIM), lambda i: (i, 0)),          # x tile
            pl.BlockSpec((bb, ACTION_DIM), lambda i: (i, 0)),         # a tile
            pl.BlockSpec((W_ROWS, LANE), lambda i: (0, 0)),           # weight slab (resident)
            pl.BlockSpec((8, LANE), lambda i: (0, 0)),                # bias slab   (resident)
        ],
        out_specs=pl.BlockSpec((1, bb), lambda i: (0, i)),            # (1, bb) q chunk
        compiler_params=pltpu.CompilerParams(
            dimension_semantics=("parallel",)),                       # v7x: shard batch over TCs
    )(x, a, w_slab, b_slab)

    return qT[0, :B].reshape(B, 1)                                    # (B, 1) q-values


# --------------------------------------------------------------------------
# Parameter init (PyTorch Linear shapes, stored transposed: (in, out)) and
# packing into the fused block-diagonal / zero-padded slabs.
# --------------------------------------------------------------------------
def init_params(key):
    ks = jax.random.split(key, 6)

    def lin(k, fan_in, fan_out):
        kw, kb = jax.random.split(k)
        bound = 1.0 / jnp.sqrt(fan_in)
        w = jax.random.uniform(kw, (fan_in, fan_out), jnp.float32, -bound, bound)
        b = jax.random.uniform(kb, (1, fan_out), jnp.float32, -bound, bound)
        return w, b

    p = {}
    p["w1s"], p["b1s"] = lin(ks[0], STATE_DIM, 64)        # state_encoder layer 1
    p["w2s"], p["b2s"] = lin(ks[1], 64, 32)               # state_encoder layer 2
    p["w1a"], p["b1a"] = lin(ks[2], ACTION_DIM, 32)       # action_encoder layer 1
    p["w2a"], p["b2a"] = lin(ks[3], 32, 32)               # action_encoder layer 2
    p["wq1"], p["bq1"] = lin(ks[4], 64, CRITIC_HIDDEN)    # q_estimator hidden
    p["wq2"], p["bq2"] = lin(ks[5], CRITIC_HIDDEN, 1)     # q_estimator output
    return p


def pack_params(p):
    """Fuse encoders block-diagonally and pack everything into two small slabs."""
    w = jnp.zeros((W_ROWS, LANE), jnp.float32)
    b = jnp.zeros((8, LANE), jnp.float32)

    # layer 1: state (12 -> cols 0:64) and action (4 -> cols 64:96) blocks
    w = w.at[R_W1S:R_W1S + STATE_DIM, 0:64].set(p["w1s"])
    w = w.at[R_W1A:R_W1A + ACTION_DIM, 64:96].set(p["w1a"])
    b = b.at[0, 0:64].set(p["b1s"][0])
    b = b.at[0, 64:96].set(p["b1a"][0])

    # layer 2: [ w2s (64,32) | 0 ; 0 | w2a (32,32) ] -> (96, 64) block-diagonal
    w = w.at[R_W2 + 0:R_W2 + 64, 0:32].set(p["w2s"])
    w = w.at[R_W2 + 64:R_W2 + 96, 32:64].set(p["w2a"])
    b = b.at[1, 0:32].set(p["b2s"][0])
    b = b.at[1, 32:64].set(p["b2a"][0])

    # layer 3: q hidden (64, 64)
    w = w.at[R_W3:R_W3 + 64, 0:CRITIC_HIDDEN].set(p["wq1"])
    b = b.at[2, 0:CRITIC_HIDDEN].set(p["bq1"][0])

    # layer 4: q output stored transposed (1, 64) in row R_W4T (rows +1..+7 stay zero)
    w = w.at[R_W4T:R_W4T + 1, 0:CRITIC_HIDDEN].set(p["wq2"].T)
    b = b.at[3, 0:1].set(p["bq2"][0])
    return w, b


def critic_ref(x, a, p):
    """Pure-JAX reference (unfused, mirrors the PyTorch module exactly)."""
    relu = lambda v: jnp.maximum(v, 0.0)
    es = relu(relu(x @ p["w1s"] + p["b1s"]) @ p["w2s"] + p["b2s"])
    ea = relu(relu(a @ p["w1a"] + p["b1a"]) @ p["w2a"] + p["b2a"])
    emb = jnp.concatenate([es, ea], axis=-1)
    hq = relu(emb @ p["wq1"] + p["bq1"])
    return hq @ p["wq2"] + p["bq2"]


if __name__ == "__main__":
    key = jax.random.PRNGKey(0)
    kp, kx, ka = jax.random.split(key, 3)

    params = init_params(kp)
    w_slab, b_slab = pack_params(params)

    x = jax.random.normal(kx, (BATCH, STATE_DIM), jnp.float32)
    a = jax.random.normal(ka, (BATCH, ACTION_DIM), jnp.float32)

    q = critic_forward(x, a, w_slab, b_slab)
    q = jax.block_until_ready(q)

    q_ref = critic_ref(x, a, params)
    assert q.shape == (BATCH, 1)
    assert jnp.allclose(q, q_ref, atol=1e-5, rtol=1e-5), (q, q_ref)

    print("KERNEL_OK")
</pallas_src>

<mosaic_0001>
module attributes {stable_mosaic.version = 11 : i64} {
  func.func @critic_kernel(%arg0: i32, %arg1: memref<128x12xf32, #tpu.memory_space<vmem>>, %arg2: memref<128x4xf32, #tpu.memory_space<vmem>>, %arg3: memref<192x128xf32, #tpu.memory_space<vmem>>, %arg4: memref<8x128xf32, #tpu.memory_space<vmem>>, %arg5: memref<1x128xf32, #tpu.memory_space<vmem>>) attributes {dimension_semantics = [#tpu.dimension_semantics<parallel>], iteration_bounds = array<i64: 1>, scalar_prefetch = 0 : i64, scratch_operands = 0 : i64, tpu.core_type = #tpu.core_type<tc>, window_params = [{transform_indices = @transform_0, window_bounds = array<i64: 128, 12>}, {transform_indices = @transform_1, window_bounds = array<i64: 128, 4>}, {pipeline_mode = #tpu.pipeline_mode<synchronous>, transform_indices = @transform_2, window_bounds = array<i64: 192, 128>}, {pipeline_mode = #tpu.pipeline_mode<synchronous>, transform_indices = @transform_3, window_bounds = array<i64: 8, 128>}, {transform_indices = @transform_4, window_bounds = array<i64: 1, 128>}]} {
    %c0 = arith.constant 0 : index
    %c0_0 = arith.constant 0 : index
    %0 = vector.load %arg1[%c0, %c0_0] : memref<128x12xf32, #tpu.memory_space<vmem>>, vector<128x12xf32>
    %c0_1 = arith.constant 0 : index
    %c0_2 = arith.constant 0 : index
    %1 = vector.load %arg2[%c0_1, %c0_2] : memref<128x4xf32, #tpu.memory_space<vmem>>, vector<128x4xf32>
    %c0_3 = arith.constant 0 : index
    %c0_4 = arith.constant 0 : index
    %2 = vector.load %arg3[%c0_3, %c0_4] : memref<192x128xf32, #tpu.memory_space<vmem>>, vector<12x128xf32>
    %cst = arith.constant dense<0.000000e+00> : vector<128x128xf32>
    %3 = tpu.matmul %0, %2, %cst {dimension_numbers = #tpu.dot_dimension_numbers<[1], [0], [0], [1], [0, 0, 1, 1], [], []>} : vector<128x12xf32>, vector<12x128xf32>, vector<128x128xf32> -> vector<128x128xf32>
    %c16 = arith.constant 16 : index
    %c0_5 = arith.constant 0 : index
    %4 = vector.load %arg3[%c16, %c0_5] : memref<192x128xf32, #tpu.memory_space<vmem>>, vector<4x128xf32>
    %cst_6 = arith.constant dense<0.000000e+00> : vector<128x128xf32>
    %5 = tpu.matmul %1, %4, %cst_6 {dimension_numbers = #tpu.dot_dimension_numbers<[1], [0], [0], [1], [0, 0, 1, 1], [], []>} : vector<128x4xf32>, vector<4x128xf32>, vector<128x128xf32> -> vector<128x128xf32>
    %6 = arith.addf %3, %5 : vector<128x128xf32>
    %c0_7 = arith.constant 0 : index
    %c0_8 = arith.constant 0 : index
    %7 = vector.load %arg4[%c0_7, %c0_8] : memref<8x128xf32, #tpu.memory_space<vmem>>, vector<1x128xf32>
    %8 = vector.broadcast %7 : vector<1x128xf32> to vector<128x128xf32>
    %9 = arith.addf %6, %8 : vector<128x128xf32>
    %cst_9 = arith.constant 0.000000e+00 : f32
    %10 = vector.broadcast %cst_9 : f32 to vector<128x128xf32>
    %11 = arith.maximumf %9, %10 : vector<128x128xf32>
    %12 = vector.extract_strided_slice %11 {offsets = [0, 0], sizes = [128, 96], strides = [1, 1]} : vector<128x128xf32> to vector<128x96xf32>
    %c24 = arith.constant 24 : index
    %c0_10 = arith.constant 0 : index
    %13 = vector.load %arg3[%c24, %c0_10] : memref<192x128xf32, #tpu.memory_space<vmem>>, vector<96x128xf32>
    %cst_11 = arith.constant dense<0.000000e+00> : vector<128x128xf32>
    %14 = tpu.matmul %12, %13, %cst_11 {dimension_numbers = #tpu.dot_dimension_numbers<[1], [0], [0], [1], [0, 0, 1, 1], [], []>} : vector<128x96xf32>, vector<96x128xf32>, vector<128x128xf32> -> vector<128x128xf32>
    %c1 = arith.constant 1 : index
    %c0_12 = arith.constant 0 : index
    %15 = vector.load %arg4[%c1, %c0_12] : memref<8x128xf32, #tpu.memory_space<vmem>>, vector<1x128xf32>
    %16 = vector.broadcast %15 : vector<1x128xf32> to vector<128x128xf32>
    %17 = arith.addf %14, %16 : vector<128x128xf32>
    %cst_13 = arith.constant 0.000000e+00 : f32
    %18 = vector.broadcast %cst_13 : f32 to vector<128x128xf32>
    %19 = arith.maximumf %17, %18 : vector<128x128xf32>
    %20 = vector.extract_strided_slice %19 {offsets = [0, 0], sizes = [128, 64], strides = [1, 1]} : vector<128x128xf32> to vector<128x64xf32>
    %c120 = arith.constant 120 : index
    %c0_14 = arith.constant 0 : index
    %21 = vector.load %arg3[%c120, %c0_14] : memref<192x128xf32, #tpu.memory_space<vmem>>, vector<64x128xf32>
    %cst_15 = arith.constant dense<0.000000e+00> : vector<128x128xf32>
    %22 = tpu.matmul %20, %21, %cst_15 {dimension_numbers = #tpu.dot_dimension_numbers<[1], [0], [0], [1], [0, 0, 1, 1], [], []>} : vector<128x64xf32>, vector<64x128xf32>, vector<128x128xf32> -> vector<128x128xf32>
    %c2 = arith.constant 2 : index
    %c0_16 = arith.constant 0 : index
    %23 = vector.load %arg4[%c2, %c0_16] : memref<8x128xf32, #tpu.memory_space<vmem>>, vector<1x128xf32>
    %24 = vector.broadcast %23 : vector<1x128xf32> to vector<128x128xf32>
    %25 = arith.addf %22, %24 : vector<128x128xf32>
    %cst_17 = arith.constant 0.000000e+00 : f32
    %26 = vector.broadcast %cst_17 : f32 to vector<128x128xf32>
    %27 = arith.maximumf %25, %26 : vector<128x128xf32>
    %c184 = arith.constant 184 : index
    %c0_18 = arith.constant 0 : index
    %28 = vector.load %arg3[%c184, %c0_18] : memref<192x128xf32, #tpu.memory_space<vmem>>, vector<8x64xf32>
    %29 = vector.extract_strided_slice %27 {offsets = [0, 0], sizes = [128, 64], strides = [1, 1]} : vector<128x128xf32> to vector<128x64xf32>
    %cst_19 = arith.constant dense<0.000000e+00> : vector<8x128xf32>
    %30 = tpu.matmul %28, %29, %cst_19 {dimension_numbers = #tpu.dot_dimension_numbers<[1], [1], [0], [0], [0, 0, 1, 0], [], []>} : vector<8x64xf32>, vector<128x64xf32>, vector<8x128xf32> -> vector<8x128xf32>
    %31 = vector.extract_strided_slice %30 {offsets = [0, 0], sizes = [1, 128], strides = [1, 1]} : vector<8x128xf32> to vector<1x128xf32>
    %c3 = arith.constant 3 : index
    %c0_20 = arith.constant 0 : index
    %32 = vector.load %arg4[%c3, %c0_20] : memref<8x128xf32, #tpu.memory_space<vmem>>, vector<1x1xf32>
    %33 = vector.broadcast %32 : vector<1x1xf32> to vector<1x128xf32>
    %34 = arith.addf %31, %33 : vector<1x128xf32>
    %c0_21 = arith.constant 0 : index
    %c0_22 = arith.constant 0 : index
    %35 = vector.load %arg5[%c0_21, %c0_22] : memref<1x128xf32, #tpu.memory_space<vmem>>, vector<1x128xf32>
    tpu.vector_store %arg5[%c0_21, %c0_22], %34 {strides = array<i32>} : memref<1x128xf32, #tpu.memory_space<vmem>>, vector<1x128xf32>,
    return
  }
  func.func @transform_0(%arg0: i32) -> (i32, i32) {
    %c0_i32 = arith.constant 0 : i32
    %c0_i32_0 = arith.constant 0 : i32
    return %arg0, %c0_i32 : i32, i32
  }
  func.func @transform_1(%arg0: i32) -> (i32, i32) {
    %c0_i32 = arith.constant 0 : i32
    %c0_i32_0 = arith.constant 0 : i32
    return %arg0, %c0_i32 : i32, i32
  }
  func.func @transform_2(%arg0: i32) -> (i32, i32) {
    %c0_i32 = arith.constant 0 : i32
    %c0_i32_0 = arith.constant 0 : i32
    %c0_i32_1 = arith.constant 0 : i32
    return %c0_i32, %c0_i32_0 : i32, i32
  }
  func.func @transform_3(%arg0: i32) -> (i32, i32) {
    %c0_i32 = arith.constant 0 : i32
    %c0_i32_0 = arith.constant 0 : i32
    %c0_i32_1 = arith.constant 0 : i32
    return %c0_i32, %c0_i32_0 : i32, i32
  }
  func.func @transform_4(%arg0: i32) -> (i32, i32) {
    %c0_i32 = arith.constant 0 : i32
    %c0_i32_0 = arith.constant 0 : i32
    return %c0_i32, %arg0 : i32, i32
  }
}

</mosaic_0001>

<llo_original>
// kernel: critic_forward.1
$region0: #{critic_forward.1}
  #allocation0 [shape = 'u32[]', space=smem, size = 0x4, offset = 0x4, fixed_abs, tag = 'smem constant byte address 0x4 - core index']
  #allocation1 [shape = 'u32[144,128]{1,0:T(1,128)}', space=vmem, size = 0x12000, scoped, tag = 'internal scratch']
  %s0 = inlined_call_operand.vmem [shape: f32[128,12], index: 0, kind: input, shape index: {}]
  %s1 = inlined_call_operand.vmem [shape: f32[128,4], index: 1, kind: input, shape index: {}]
  %s2 = inlined_call_operand.vmem [shape: f32[192,128], index: 2, kind: input, shape index: {}]
  %s3 = inlined_call_operand.vmem [shape: f32[8,128], index: 3, kind: input, shape index: {}]
  %s4 = inlined_call_operand.vmem [shape: f32[1,128], index: 4, kind: output, shape index: {}]
  %s5 = sld [smem:[#allocation0]]
  $region26: #{critic_forward.1} parent=0
    _
  %s7 = ssub.s32 1, %s5
  %s8 = scalar_select 0, %s7, %s5
  // Predicated region
  $region2: #{critic_forward.1} parent=0 // pred_check
    _
  $region3: #{critic_forward.1} parent=0 // pred_check_branch
    %10 = sbr.rel (0) target = $region5
  $region4: #{critic_forward.1} parent=0 // pred_region
    _
  $region5: #{critic_forward.1} parent=0 // pred_fallthru
    _
  // Predicated region
  $region6: #{critic_forward.1} parent=0 // pred_check
    _
  $region7: #{critic_forward.1} parent=0 // pred_check_branch
    %12 = sbr.rel (0) target = $region9
  $region8: #{critic_forward.1} parent=0 // pred_region
    _
  $region9: #{critic_forward.1} parent=0 // pred_fallthru
    _
  // Predicated region
  $region10: #{critic_forward.1} parent=0 // pred_check
    _
  $region11: #{critic_forward.1} parent=0 // pred_check_branch
    %14 = sbr.rel (0) target = $region13
  $region12: #{critic_forward.1} parent=0 // pred_region
    _
  $region13: #{critic_forward.1} parent=0 // pred_fallthru
    _
  // Predicated region
  $region14: #{critic_forward.1} parent=0 // pred_check
    _
  $region15: #{critic_forward.1} parent=0 // pred_check_branch
    %16 = sbr.rel (0) target = $region17
  $region16: #{critic_forward.1} parent=0 // pred_region
    _
  $region17: #{critic_forward.1} parent=0 // pred_fallthru
    _
  %v17 = vld [vmem:[%s0] sm:$0xff]
  %v18 = vld [vmem:[%s0 + $0x8] sm:$0xff]
  %v19 = vld [vmem:[%s0 + $0x10] sm:$0xff]
  %v20 = vld [vmem:[%s0 + $0x18] sm:$0xff]
  %v21 = vld [vmem:[%s0 + $0x20] sm:$0xff]
  %v22 = vld [vmem:[%s0 + $0x28] sm:$0xff]
  %v23 = vld [vmem:[%s0 + $0x30] sm:$0xff]
  %v24 = vld [vmem:[%s0 + $0x38] sm:$0xff]
  %v25 = vld [vmem:[%s0 + $0x40] sm:$0xff]
  %v26 = vld [vmem:[%s0 + $0x48] sm:$0xff]
  %v27 = vld [vmem:[%s0 + $0x50] sm:$0xff]
  %v28 = vld [vmem:[%s0 + $0x58] sm:$0xff]
  %v29 = vld [vmem:[%s0 + $0x60] sm:$0xff]
  %v30 = vld [vmem:[%s0 + $0x68] sm:$0xff]
  %v31 = vld [vmem:[%s0 + $0x70] sm:$0xff]
  %v32 = vld [vmem:[%s0 + $0x78] sm:$0xff]
  %v33 = vld [vmem:[%s1] sm:$0xff]
  %v34 = vld [vmem:[%s1 + $0x8] sm:$0xff]
  %v35 = vld [vmem:[%s1 + $0x10] sm:$0xff]
  %v36 = vld [vmem:[%s1 + $0x18] sm:$0xff]
  %v37 = vld [vmem:[%s1 + $0x20] sm:$0xff]
  %v38 = vld [vmem:[%s1 + $0x28] sm:$0xff]
  %v39 = vld [vmem:[%s1 + $0x30] sm:$0xff]
  %v40 = vld [vmem:[%s1 + $0x38] sm:$0xff]
  %v41 = vld [vmem:[%s1 + $0x40] sm:$0xff]
  %v42 = vld [vmem:[%s1 + $0x48] sm:$0xff]
  %v43 = vld [vmem:[%s1 + $0x50] sm:$0xff]
  %v44 = vld [vmem:[%s1 + $0x58] sm:$0xff]
  %v45 = vld [vmem:[%s1 + $0x60] sm:$0xff]
  %v46 = vld [vmem:[%s1 + $0x68] sm:$0xff]
  %v47 = vld [vmem:[%s1 + $0x70] sm:$0xff]
  %v48 = vld [vmem:[%s1 + $0x78] sm:$0xff]
  %v49 = vld [vmem:[%s2] sm:$0xff]
  %v50 = vld [vmem:[%s2 + $0x8] sm:$0xf]
  %v51 = vld [vmem:[%s2 + $0x10] sm:$0xf]
  %vm52 = vcmask 31744
  %v54 = vsel %vm52, %v33, 0
  %v57 = vsel %vm52, %v34, 0
  %v60 = vsel %vm52, %v35, 0
  %v63 = vsel %vm52, %v36, 0
  %v66 = vsel %vm52, %v37, 0
  %v69 = vsel %vm52, %v38, 0
  %v72 = vsel %vm52, %v39, 0
  %v75 = vsel %vm52, %v40, 0
  %v78 = vsel %vm52, %v41, 0
  %v81 = vsel %vm52, %v42, 0
  %v84 = vsel %vm52, %v43, 0
  %v87 = vsel %vm52, %v44, 0
  %v90 = vsel %vm52, %v45, 0
  %v93 = vsel %vm52, %v46, 0
  %v96 = vsel %vm52, %v47, 0
  %v99 = vsel %vm52, %v48, 0
  %vm101 = vcmask 1043456
  %v103 = vsel %vm101, %v51, 0
  %105 = vmatprep.subr.mxu0 0.0
  %106 = vmatpush1.msra.mxu0 %v103
  %107 = vmatprep.subr.mxu0 0.0
  %108 = vmatpush1.msra.mxu0 0.0
  %109 = vmatprep.subr.mxu0 0.0
  %110 = vmatpush1.msra.mxu0 0.0
  %111 = vmatprep.subr.mxu0 0.0
  %112 = vmatpush1.msra.mxu0 0.0
  %113 = vmatprep.subr.mxu0 0.0
  %114 = vmatpush1.msra.mxu0 0.0
  %115 = vmatprep.subr.mxu0 0.0
  %116 = vmatpush1.msra.mxu0 0.0
  %117 = vmatprep.subr.mxu0 0.0
  %118 = vmatpush1.msra.mxu0 0.0
  %119 = vmatprep.subr.mxu0 0.0
  %120 = vmatpush1.msra.mxu0 0.0
  %121 = vmatprep.subr.mxu0 0.0
  %122 = vmatpush1.msra.mxu0 0.0
  %123 = vmatprep.subr.mxu0 0.0
  %124 = vmatpush1.msra.mxu0 0.0
  %125 = vmatprep.subr.mxu0 0.0
  %126 = vmatpush1.msra.mxu0 0.0
  %127 = vmatprep.subr.mxu0 0.0
  %128 = vmatpush1.msra.mxu0 0.0
  %129 = vmatprep.subr.mxu0 0.0
  %130 = vmatpush1.msra.mxu0 0.0
  %131 = vmatprep.subr.mxu0 0.0
  %132 = vmatpush1.msra.mxu0 0.0
  %133 = vmatprep.subr.mxu0 0.0
  %134 = vmatpush1.msra.mxu0 0.0
  %135 = vmatprep.subr.mxu0 0.0
  %136 = vmatpush1.msra.mxu0 0.0
  %137 = vmatprep.subr.mxu0 0.0
  %138 = vmatpush1.msra.mxu0 0.0
  %139 = vmatprep.subr.mxu0 0.0
  %140 = vmatpush1.msra.mxu0 0.0
  %141 = vmatprep.subr.mxu0 0.0
  %142 = vmatpush1.msra.mxu0 0.0
  %143 = vmatprep.subr.mxu0 0.0
  %144 = vmatpush1.msra.mxu0 0.0
  %145 = vmatprep.subr.mxu0 0.0
  %146 = vmatpush1.msra.mxu0 0.0
  %147 = vmatprep.subr.mxu0 0.0
  %148 = vmatpush1.msra.mxu0 0.0
  %149 = vmatprep.subr.mxu0 0.0
  %150 = vmatpush1.msra.mxu0 0.0
  %151 = vmatprep.subr.mxu0 0.0
  %152 = vmatpush1.msra.mxu0 0.0
  %153 = vmatprep.subr.mxu0 0.0
  %154 = vmatpush1.msra.mxu0 0.0
  %155 = vmatprep.subr.mxu0 0.0
  %156 = vmatpush1.msra.mxu0 0.0
  %157 = vmatprep.subr.mxu0 0.0
  %158 = vmatpush1.msra.mxu0 0.0
  %159 = vmatprep.subr.mxu0 0.0
  %160 = vmatpush1.msra.mxu0 0.0
  %161 = vmatprep.subr.mxu0 0.0
  %162 = vmatpush1.msra.mxu0 0.0
  %163 = vmatprep.subr.mxu0 0.0
  %164 = vmatpush1.msra.mxu0 0.0
  %165 = vmatprep.subr.mxu0 0.0
  %166 = vmatpush1.msra.mxu0 0.0
  %167 = vmatprep.subr.mxu0 0.0
  %168 = vmatpush1.msra.mxu0 0.0
  %169 = vmatprep.mubr.f32.mxu0 0.0
  %170 = vmatmul.mubr.f32.gmra.mrb[0].mxu0 %v54
  %v171 = vpop.f32.mrb[0].mxu0
  %v172 = vadd.f32 0.0, %v171
  %v173 = vpop.f32.mrb[0].mxu0
  %174 = vmatprep.mubr.f32.mxu0 0.0
  %175 = vmatmul.mubr.f32.gmra.mrb[0].mxu0 %v57
  %v176 = vpop.f32.mrb[0].mxu0
  %v177 = vadd.f32 0.0, %v176
  %v178 = vpop.f32.mrb[0].mxu0
  %179 = vmatprep.mubr.f32.mxu0 0.0
  %180 = vmatmul.mubr.f32.gmra.mrb[0].mxu0 %v60
  %v181 = vpop.f32.mrb[0].mxu0
  %v182 = vadd.f32 0.0, %v181
  %v183 = vpop.f32.mrb[0].mxu0
  %184 = vmatprep.mubr.f32.mxu0 0.0
  %185 = vmatmul.mubr.f32.gmra.mrb[0].mxu0 %v63
  %v186 = vpop.f32.mrb[0].mxu0
  %v187 = vadd.f32 0.0, %v186
  %v188 = vpop.f32.mrb[0].mxu0
  %189 = vmatprep.mubr.f32.mxu0 0.0
  %190 = vmatmul.mubr.f32.gmra.mrb[0].mxu0 %v66
  %v191 = vpop.f32.mrb[0].mxu0
  %v192 = vadd.f32 0.0, %v191
  %v193 = vpop.f32.mrb[0].mxu0
  %194 = vmatprep.mubr.f32.mxu0 0.0
  %195 = vmatmul.mubr.f32.gmra.mrb[0].mxu0 %v69
  %v196 = vpop.f32.mrb[0].mxu0
  %v197 = vadd.f32 0.0, %v196
  %v198 = vpop.f32.mrb[0].mxu0
  %199 = vmatprep.mubr.f32.mxu0 0.0
  %200 = vmatmul.mubr.f32.gmra.mrb[0].mxu0 %v72
  %v201 = vpop.f32.mrb[0].mxu0
  %v202 = vadd.f32 0.0, %v201
  %v203 = vpop.f32.mrb[0].mxu0
  %204 = vmatprep.mubr.f32.mxu0 0.0
  %205 = vmatmul.mubr.f32.gmra.mrb[0].mxu0 %v75
  %v206 = vpop.f32.mrb[0].mxu0
  %v207 = vadd.f32 0.0, %v206
  %v208 = vpop.f32.mrb[0].mxu0
  %209 = vmatprep.mubr.f32.mxu0 0.0
  %210 = vmatmul.mubr.f32.gmra.mrb[0].mxu0 %v78
  %v211 = vpop.f32.mrb[0].mxu0
  %v212 = vadd.f32 0.0, %v211
  %v213 = vpop.f32.mrb[0].mxu0
  %214 = vmatprep.mubr.f32.mxu0 0.0
  %215 = vmatmul.mubr.f32.gmra.mrb[0].mxu0 %v81
  %v216 = vpop.f32.mrb[0].mxu0
  %v217 = vadd.f32 0.0, %v216
  %v218 = vpop.f32.mrb[0].mxu0
  %219 = vmatprep.mubr.f32.mxu0 0.0
  %220 = vmatmul.mubr.f32.gmra.mrb[0].mxu0 %v84
  %v221 = vpop.f32.mrb[0].mxu0
  %v222 = vadd.f32 0.0, %v221
  %v223 = vpop.f32.mrb[0].mxu0
  %224 = vmatprep.mubr.f32.mxu0 0.0
  %225 = vmatmul.mubr.f32.gmra.mrb[0].mxu0 %v87
  %v226 = vpop.f32.mrb[0].mxu0
  %v227 = vadd.f32 0.0, %v226
  %v228 = vpop.f32.mrb[0].mxu0
  %229 = vmatprep.mubr.f32.mxu0 0.0
  %230 = vmatmul.mubr.f32.gmra.mrb[0].mxu0 %v90
  %v231 = vpop.f32.mrb[0].mxu0
  %v232 = vadd.f32 0.0, %v231
  %v233 = vpop.f32.mrb[0].mxu0
  %234 = vmatprep.mubr.f32.mxu0 0.0
  %235 = vmatmul.mubr.f32.gmra.mrb[0].mxu0 %v93
  %v236 = vpop.f32.mrb[0].mxu0
  %v237 = vadd.f32 0.0, %v236
  %v238 = vpop.f32.mrb[0].mxu0
  %239 = vmatprep.mubr.f32.mxu0 0.0
  %240 = vmatmul.mubr.f32.gmra.mrb[0].mxu0 %v96
  %v241 = vpop.f32.mrb[0].mxu0
  %v242 = vadd.f32 0.0, %v241
  %v243 = vpop.f32.mrb[0].mxu0
  %244 = vmatprep.mubr.f32.mxu0 0.0
  %245 = vmatmul.mubr.f32.gmra.mrb[0].mxu0 %v99
  %v246 = vpop.f32.mrb[0].mxu0
  %v247 = vadd.f32 0.0, %v246
  %v248 = vpop.f32.mrb[0].mxu0
  %249 = vdwg.mxu0
  %vm250 = vcmask 97280
  %v252 = vsel %vm250, %v17, 0
  %v255 = vsel %vm250, %v18, 0
  %v258 = vsel %vm250, %v19, 0
  %v261 = vsel %vm250, %v20, 0
  %v264 = vsel %vm250, %v21, 0
  %v267 = vsel %vm250, %v22, 0
  %v270 = vsel %vm250, %v23, 0
  %v273 = vsel %vm250, %v24, 0
  %v276 = vsel %vm250, %v25, 0
  %v279 = vsel %vm250, %v26, 0
  %v282 = vsel %vm250, %v27, 0
  %v285 = vsel %vm250, %v28, 0
  %v288 = vsel %vm250, %v29, 0
  %v291 = vsel %vm250, %v30, 0
  %v294 = vsel %vm250, %v31, 0
  %v297 = vsel %vm250, %v32, 0
  %v300 = vsel %vm101, %v50, 0
  %302 = vmatprep.subr.mxu0 0.0
  %303 = vmatpush1.msra.mxu0 %v49
  %304 = vmatprep.subr.mxu0 0.0
  %305 = vmatpush1.msra.mxu0 %v300
  %306 = vmatprep.subr.mxu0 0.0
  %307 = vmatpush1.msra.mxu0 0.0
  %308 = vmatprep.subr.mxu0 0.0
  %309 = vmatpush1.msra.mxu0 0.0
  %310 = vmatprep.subr.mxu0 0.0
  %311 = vmatpush1.msra.mxu0 0.0
  %312 = vmatprep.subr.mxu0 0.0
  %313 = vmatpush1.msra.mxu0 0.0
  %314 = vmatprep.subr.mxu0 0.0
  %315 = vmatpush1.msra.mxu0 0.0
  %316 = vmatprep.subr.mxu0 0.0
  %317 = vmatpush1.msra.mxu0 0.0
  %318 = vmatprep.subr.mxu0 0.0
  %319 = vmatpush1.msra.mxu0 0.0
  %320 = vmatprep.subr.mxu0 0.0
  %321 = vmatpush1.msra.mxu0 0.0
  %322 = vmatprep.subr.mxu0 0.0
  %323 = vmatpush1.msra.mxu0 0.0
  %324 = vmatprep.subr.mxu0 0.0
  %325 = vmatpush1.msra.mxu0 0.0
  %326 = vmatprep.subr.mxu0 0.0
  %327 = vmatpush1.msra.mxu0 0.0
  %328 = vmatprep.subr.mxu0 0.0
  %329 = vmatpush1.msra.mxu0 0.0
  %330 = vmatprep.subr.mxu0 0.0
  %331 = vmatpush1.msra.mxu0 0.0
  %332 = vmatprep.subr.mxu0 0.0
  %333 = vmatpush1.msra.mxu0 0.0
  %334 = vmatprep.subr.mxu0 0.0
  %335 = vmatpush1.msra.mxu0 0.0
  %336 = vmatprep.subr.mxu0 0.0
  %337 = vmatpush1.msra.mxu0 0.0
  %338 = vmatprep.subr.mxu0 0.0
  %339 = vmatpush1.msra.mxu0 0.0
  %340 = vmatprep.subr.mxu0 0.0
  %341 = vmatpush1.msra.mxu0 0.0
  %342 = vmatprep.subr.mxu0 0.0
  %343 = vmatpush1.msra.mxu0 0.0
  %344 = vmatprep.subr.mxu0 0.0
  %345 = vmatpush1.msra.mxu0 0.0
  %346 = vmatprep.subr.mxu0 0.0
  %347 = vmatpush1.msra.mxu0 0.0
  %348 = vmatprep.subr.mxu0 0.0
  %349 = vmatpush1.msra.mxu0 0.0
  %350 = vmatprep.subr.mxu0 0.0
  %351 = vmatpush1.msra.mxu0 0.0
  %352 = vmatprep.subr.mxu0 0.0
  %353 = vmatpush1.msra.mxu0 0.0
  %354 = vmatprep.subr.mxu0 0.0
  %355 = vmatpush1.msra.mxu0 0.0
  %356 = vmatprep.subr.mxu0 0.0
  %357 = vmatpush1.msra.mxu0 0.0
  %358 = vmatprep.subr.mxu0 0.0
  %359 = vmatpush1.msra.mxu0 0.0
  %360 = vmatprep.subr.mxu0 0.0
  %361 = vmatpush1.msra.mxu0 0.0
  %362 = vmatprep.subr.mxu0 0.0
  %363 = vmatpush1.msra.mxu0 0.0
  %364 = vmatprep.subr.mxu0 0.0
  %365 = vmatpush1.msra.mxu0 0.0
  %366 = vmatprep.mubr.f32.mxu0 0.0
  %367 = vmatmul.mubr.f32.gmra.mrb[0].mxu0 %v252
  %v368 = vpop.f32.mrb[0].mxu0
  %v369 = vadd.f32 %v172, %v368
  %v370 = vpop.f32.mrb[0].mxu0
  %371 = vmatprep.mubr.f32.mxu0 0.0
  %372 = vmatmul.mubr.f32.gmra.mrb[0].mxu0 %v255
  %v373 = vpop.f32.mrb[0].mxu0
  %v374 = vadd.f32 %v177, %v373
  %v375 = vpop.f32.mrb[0].mxu0
  %376 = vmatprep.mubr.f32.mxu0 0.0
  %377 = vmatmul.mubr.f32.gmra.mrb[0].mxu0 %v258
  %v378 = vpop.f32.mrb[0].mxu0
  %v379 = vadd.f32 %v182, %v378
  %v380 = vpop.f32.mrb[0].mxu0
  %381 = vmatprep.mubr.f32.mxu0 0.0
  %382 = vmatmul.mubr.f32.gmra.mrb[0].mxu0 %v261
  %v383 = vpop.f32.mrb[0].mxu0
  %v384 = vadd.f32 %v187, %v383
  %v385 = vpop.f32.mrb[0].mxu0
  %386 = vmatprep.mubr.f32.mxu0 0.0
  %387 = vmatmul.mubr.f32.gmra.mrb[0].mxu0 %v264
  %v388 = vpop.f32.mrb[0].mxu0
  %v389 = vadd.f32 %v192, %v388
  %v390 = vpop.f32.mrb[0].mxu0
  %391 = vmatprep.mubr.f32.mxu0 0.0
  %392 = vmatmul.mubr.f32.gmra.mrb[0].mxu0 %v267
  %v393 = vpop.f32.mrb[0].mxu0
  %v394 = vadd.f32 %v197, %v393
  %v395 = vpop.f32.mrb[0].mxu0
  %396 = vmatprep.mubr.f32.mxu0 0.0
  %397 = vmatmul.mubr.f32.gmra.mrb[0].mxu0 %v270
  %v398 = vpop.f32.mrb[0].mxu0
  %v399 = vadd.f32 %v202, %v398
  %v400 = vpop.f32.mrb[0].mxu0
  %401 = vmatprep.mubr.f32.mxu0 0.0
  %402 = vmatmul.mubr.f32.gmra.mrb[0].mxu0 %v273
  %v403 = vpop.f32.mrb[0].mxu0
  %v404 = vadd.f32 %v207, %v403
  %v405 = vpop.f32.mrb[0].mxu0
  %406 = vmatprep.mubr.f32.mxu0 0.0
  %407 = vmatmul.mubr.f32.gmra.mrb[0].mxu0 %v276
  %v408 = vpop.f32.mrb[0].mxu0
  %v409 = vadd.f32 %v212, %v408
  %v410 = vpop.f32.mrb[0].mxu0
  %411 = vmatprep.mubr.f32.mxu0 0.0
  %412 = vmatmul.mubr.f32.gmra.mrb[0].mxu0 %v279
  %v413 = vpop.f32.mrb[0].mxu0
  %v414 = vadd.f32 %v217, %v413
  %v415 = vpop.f32.mrb[0].mxu0
  %416 = vmatprep.mubr.f32.mxu0 0.0
  %417 = vmatmul.mubr.f32.gmra.mrb[0].mxu0 %v282
  %v418 = vpop.f32.mrb[0].mxu0
  %v419 = vadd.f32 %v222, %v418
  %v420 = vpop.f32.mrb[0].mxu0
  %421 = vmatprep.mubr.f32.mxu0 0.0
  %422 = vmatmul.mubr.f32.gmra.mrb[0].mxu0 %v285
  %v423 = vpop.f32.mrb[0].mxu0
  %v424 = vadd.f32 %v227, %v423
  %v425 = vpop.f32.mrb[0].mxu0
  %426 = vmatprep.mubr.f32.mxu0 0.0
  %427 = vmatmul.mubr.f32.gmra.mrb[0].mxu0 %v288
  %v428 = vpop.f32.mrb[0].mxu0
  %v429 = vadd.f32 %v232, %v428
  %v430 = vpop.f32.mrb[0].mxu0
  %431 = vmatprep.mubr.f32.mxu0 0.0
  %432 = vmatmul.mubr.f32.gmra.mrb[0].mxu0 %v291
  %v433 = vpop.f32.mrb[0].mxu0
  %v434 = vadd.f32 %v237, %v433
  %v435 = vpop.f32.mrb[0].mxu0
  %436 = vmatprep.mubr.f32.mxu0 0.0
  %437 = vmatmul.mubr.f32.gmra.mrb[0].mxu0 %v294
  %v438 = vpop.f32.mrb[0].mxu0
  %v439 = vadd.f32 %v242, %v438
  %v440 = vpop.f32.mrb[0].mxu0
  %441 = vmatprep.mubr.f32.mxu0 0.0
  %442 = vmatmul.mubr.f32.gmra.mrb[0].mxu0 %v297
  %v443 = vpop.f32.mrb[0].mxu0
  %v444 = vadd.f32 %v247, %v443
  %v445 = vpop.f32.mrb[0].mxu0
  %446 = vdwg.mxu0
  %v447 = vld [vmem:[%s3] sm:$0x1]
  %v448 = vlaneseq
  %v449 = vshrl.u32 %v448, 7
  %v450 = vsub.s32 0, %v449
  %v451 = vrot.slane %v447, %v450
  %v452 = vadd.f32 %v369, %v451
  %v453 = vadd.f32 %v374, %v451
  %v454 = vadd.f32 %v379, %v451
  %v455 = vadd.f32 %v384, %v451
  %v456 = vadd.f32 %v389, %v451
  %v457 = vadd.f32 %v394, %v451
  %v458 = vadd.f32 %v399, %v451
  %v459 = vadd.f32 %v404, %v451
  %v460 = vadd.f32 %v409, %v451
  %v461 = vadd.f32 %v414, %v451
  %v462 = vadd.f32 %v419, %v451
  %v463 = vadd.f32 %v424, %v451
  %v464 = vadd.f32 %v429, %v451
  %v465 = vadd.f32 %v434, %v451
  %v466 = vadd.f32 %v439, %v451
  %v467 = vadd.f32 %v444, %v451
  %v468 = vmax.f32 %v452, 0.0
  %v469 = vmax.f32 %v453, 0.0
  %v470 = vmax.f32 %v454, 0.0
  %v471 = vmax.f32 %v455, 0.0
  %v472 = vmax.f32 %v456, 0.0
  %v473 = vmax.f32 %v457, 0.0
  %v474 = vmax.f32 %v458, 0.0
  %v475 = vmax.f32 %v459, 0.0
  %v476 = vmax.f32 %v460, 0.0
  %v477 = vmax.f32 %v461, 0.0
  %v478 = vmax.f32 %v462, 0.0
  %v479 = vmax.f32 %v463, 0.0
  %v480 = vmax.f32 %v464, 0.0
  %v481 = vmax.f32 %v465, 0.0
  %v482 = vmax.f32 %v466, 0.0
  %v483 = vmax.f32 %v467, 0.0
  %v484 = vld [vmem:[%s2 + $0x18] sm:$0xff]
  %v485 = vld [vmem:[%s2 + $0x20] sm:$0xff]
  %v486 = vld [vmem:[%s2 + $0x28] sm:$0xff]
  %v487 = vld [vmem:[%s2 + $0x30] sm:$0xff]
  %v488 = vld [vmem:[%s2 + $0x38] sm:$0xff]
  %v489 = vld [vmem:[%s2 + $0x40] sm:$0xff]
  %v490 = vld [vmem:[%s2 + $0x48] sm:$0xff]
  %v491 = vld [vmem:[%s2 + $0x50] sm:$0xff]
  %v492 = vld [vmem:[%s2 + $0x58] sm:$0xff]
  %v493 = vld [vmem:[%s2 + $0x60] sm:$0xff]
  %v494 = vld [vmem:[%s2 + $0x68] sm:$0xff]
  %v495 = vld [vmem:[%s2 + $0x70] sm:$0xff]
  %v496 = vld [vmem:[%s3 + $0x1] sm:$0x1]
  %v497 = vlaneseq
  %v498 = vshrl.u32 %v497, 7
  %v499 = vsub.s32 0, %v498
  %v500 = vrot.slane %v496, %v499
  %vm501 = vcmask 785408
  %v503 = vsel %vm501, %v468, 0
  %v506 = vsel %vm501, %v469, 0
  %v509 = vsel %vm501, %v470, 0
  %v512 = vsel %vm501, %v471, 0
  %v515 = vsel %vm501, %v472, 0
  %v518 = vsel %vm501, %v473, 0
  %v521 = vsel %vm501, %v474, 0
  %v524 = vsel %vm501, %v475, 0
  %v527 = vsel %vm501, %v476, 0
  %v530 = vsel %vm501, %v477, 0
  %v533 = vsel %vm501, %v478, 0
  %v536 = vsel %vm501, %v479, 0
  %v539 = vsel %vm501, %v480, 0
  %v542 = vsel %vm501, %v481, 0
  %v545 = vsel %vm501, %v482, 0
  %v548 = vsel %vm501, %v483, 0
  %550 = vmatprep.subr.mxu0 0.0
  %551 = vmatpush1.msra.mxu0 %v484
  %552 = vmatprep.subr.mxu0 0.0
  %553 = vmatpush1.msra.mxu0 %v485
  %554 = vmatprep.subr.mxu0 0.0
  %555 = vmatpush1.msra.mxu0 %v486
  %556 = vmatprep.subr.mxu0 0.0
  %557 = vmatpush1.msra.mxu0 %v487
  %558 = vmatprep.subr.mxu0 0.0
  %559 = vmatpush1.msra.mxu0 %v488
  %560 = vmatprep.subr.mxu0 0.0
  %561 = vmatpush1.msra.mxu0 %v489
  %562 = vmatprep.subr.mxu0 0.0
  %563 = vmatpush1.msra.mxu0 %v490
  %564 = vmatprep.subr.mxu0 0.0
  %565 = vmatpush1.msra.mxu0 %v491
  %566 = vmatprep.subr.mxu0 0.0
  %567 = vmatpush1.msra.mxu0 %v492
  %568 = vmatprep.subr.mxu0 0.0
  %569 = vmatpush1.msra.mxu0 %v493
  %570 = vmatprep.subr.mxu0 0.0
  %571 = vmatpush1.msra.mxu0 %v494
  %572 = vmatprep.subr.mxu0 0.0
  %573 = vmatpush1.msra.mxu0 %v495
  %574 = vmatprep.subr.mxu0 0.0
  %575 = vmatpush1.msra.mxu0 0.0
  %576 = vmatprep.subr.mxu0 0.0
  %577 = vmatpush1.msra.mxu0 0.0
  %578 = vmatprep.subr.mxu0 0.0
  %579 = vmatpush1.msra.mxu0 0.0
  %580 = vmatprep.subr.mxu0 0.0
  %581 = vmatpush1.msra.mxu0 0.0
  %582 = vmatprep.subr.mxu0 0.0
  %583 = vmatpush1.msra.mxu0 0.0
  %584 = vmatprep.subr.mxu0 0.0
  %585 = vmatpush1.msra.mxu0 0.0
  %586 = vmatprep.subr.mxu0 0.0
  %587 = vmatpush1.msra.mxu0 0.0
  %588 = vmatprep.subr.mxu0 0.0
  %589 = vmatpush1.msra.mxu0 0.0
  %590 = vmatprep.subr.mxu0 0.0
  %591 = vmatpush1.msra.mxu0 0.0
  %592 = vmatprep.subr.mxu0 0.0
  %593 = vmatpush1.msra.mxu0 0.0
  %594 = vmatprep.subr.mxu0 0.0
  %595 = vmatpush1.msra.mxu0 0.0
  %596 = vmatprep.subr.mxu0 0.0
  %597 = vmatpush1.msra.mxu0 0.0
  %598 = vmatprep.subr.mxu0 0.0
  %599 = vmatpush1.msra.mxu0 0.0
  %600 = vmatprep.subr.mxu0 0.0
  %601 = vmatpush1.msra.mxu0 0.0
  %602 = vmatprep.subr.mxu0 0.0
  %603 = vmatpush1.msra.mxu0 0.0
  %604 = vmatprep.subr.mxu0 0.0
  %605 = vmatpush1.msra.mxu0 0.0
  %606 = vmatprep.subr.mxu0 0.0
  %607 = vmatpush1.msra.mxu0 0.0
  %608 = vmatprep.subr.mxu0 0.0
  %609 = vmatpush1.msra.mxu0 0.0
  %610 = vmatprep.subr.mxu0 0.0
  %611 = vmatpush1.msra.mxu0 0.0
  %612 = vmatprep.subr.mxu0 0.0
  %613 = vmatpush1.msra.mxu0 0.0
  %614 = vmatprep.mubr.f32.mxu0 0.0
  %615 = vmatmul.mubr.f32.gmra.mrb[0].mxu0 %v503
  %v616 = vpop.f32.mrb[0].mxu0
  %v617 = vadd.f32 %v500, %v616
  %v618 = vpop.f32.mrb[0].mxu0
  %619 = vmatprep.mubr.f32.mxu0 0.0
  %620 = vmatmul.mubr.f32.gmra.mrb[0].mxu0 %v506
  %v621 = vpop.f32.mrb[0].mxu0
  %v622 = vadd.f32 %v500, %v621
  %v623 = vpop.f32.mrb[0].mxu0
  %624 = vmatprep.mubr.f32.mxu0 0.0
  %625 = vmatmul.mubr.f32.gmra.mrb[0].mxu0 %v509
  %v626 = vpop.f32.mrb[0].mxu0
  %v627 = vadd.f32 %v500, %v626
  %v628 = vpop.f32.mrb[0].mxu0
  %629 = vmatprep.mubr.f32.mxu0 0.0
  %630 = vmatmul.mubr.f32.gmra.mrb[0].mxu0 %v512
  %v631 = vpop.f32.mrb[0].mxu0
  %v632 = vadd.f32 %v500, %v631
  %v633 = vpop.f32.mrb[0].mxu0
  %634 = vmatprep.mubr.f32.mxu0 0.0
  %635 = vmatmul.mubr.f32.gmra.mrb[0].mxu0 %v515
  %v636 = vpop.f32.mrb[0].mxu0
  %v637 = vadd.f32 %v500, %v636
  %v638 = vpop.f32.mrb[0].mxu0
  %639 = vmatprep.mubr.f32.mxu0 0.0
  %640 = vmatmul.mubr.f32.gmra.mrb[0].mxu0 %v518
  %v641 = vpop.f32.mrb[0].mxu0
  %v642 = vadd.f32 %v500, %v641
  %v643 = vpop.f32.mrb[0].mxu0
  %644 = vmatprep.mubr.f32.mxu0 0.0
  %645 = vmatmul.mubr.f32.gmra.mrb[0].mxu0 %v521
  %v646 = vpop.f32.mrb[0].mxu0
  %v647 = vadd.f32 %v500, %v646
  %v648 = vpop.f32.mrb[0].mxu0
  %649 = vmatprep.mubr.f32.mxu0 0.0
  %650 = vmatmul.mubr.f32.gmra.mrb[0].mxu0 %v524
  %v651 = vpop.f32.mrb[0].mxu0
  %v652 = vadd.f32 %v500, %v651
  %v653 = vpop.f32.mrb[0].mxu0
  %654 = vmatprep.mubr.f32.mxu0 0.0
  %655 = vmatmul.mubr.f32.gmra.mrb[0].mxu0 %v527
  %v656 = vpop.f32.mrb[0].mxu0
  %v657 = vadd.f32 %v500, %v656
  %v658 = vpop.f32.mrb[0].mxu0
  %659 = vmatprep.mubr.f32.mxu0 0.0
  %660 = vmatmul.mubr.f32.gmra.mrb[0].mxu0 %v530
  %v661 = vpop.f32.mrb[0].mxu0
  %v662 = vadd.f32 %v500, %v661
  %v663 = vpop.f32.mrb[0].mxu0
  %664 = vmatprep.mubr.f32.mxu0 0.0
  %665 = vmatmul.mubr.f32.gmra.mrb[0].mxu0 %v533
  %v666 = vpop.f32.mrb[0].mxu0
  %v667 = vadd.f32 %v500, %v666
  %v668 = vpop.f32.mrb[0].mxu0
  %669 = vmatprep.mubr.f32.mxu0 0.0
  %670 = vmatmul.mubr.f32.gmra.mrb[0].mxu0 %v536
  %v671 = vpop.f32.mrb[0].mxu0
  %v672 = vadd.f32 %v500, %v671
  %v673 = vpop.f32.mrb[0].mxu0
  %674 = vmatprep.mubr.f32.mxu0 0.0
  %675 = vmatmul.mubr.f32.gmra.mrb[0].mxu0 %v539
  %v676 = vpop.f32.mrb[0].mxu0
  %v677 = vadd.f32 %v500, %v676
  %v678 = vpop.f32.mrb[0].mxu0
  %679 = vmatprep.mubr.f32.mxu0 0.0
  %680 = vmatmul.mubr.f32.gmra.mrb[0].mxu0 %v542
  %v681 = vpop.f32.mrb[0].mxu0
  %v682 = vadd.f32 %v500, %v681
  %v683 = vpop.f32.mrb[0].mxu0
  %684 = vmatprep.mubr.f32.mxu0 0.0
  %685 = vmatmul.mubr.f32.gmra.mrb[0].mxu0 %v545
  %v686 = vpop.f32.mrb[0].mxu0
  %v687 = vadd.f32 %v500, %v686
  %v688 = vpop.f32.mrb[0].mxu0
  %689 = vmatprep.mubr.f32.mxu0 0.0
  %690 = vmatmul.mubr.f32.gmra.mrb[0].mxu0 %v548
  %v691 = vpop.f32.mrb[0].mxu0
  %v692 = vadd.f32 %v500, %v691
  %v693 = vpop.f32.mrb[0].mxu0
  %694 = vdwg.mxu0
  %v695 = vmax.f32 %v617, 0.0
  %v696 = vmax.f32 %v622, 0.0
  %v697 = vmax.f32 %v627, 0.0
  %v698 = vmax.f32 %v632, 0.0
  %v699 = vmax.f32 %v637, 0.0
  %v700 = vmax.f32 %v642, 0.0
  %v701 = vmax.f32 %v647, 0.0
  %v702 = vmax.f32 %v652, 0.0
  %v703 = vmax.f32 %v657, 0.0
  %v704 = vmax.f32 %v662, 0.0
  %v705 = vmax.f32 %v667, 0.0
  %v706 = vmax.f32 %v672, 0.0
  %v707 = vmax.f32 %v677, 0.0
  %v708 = vmax.f32 %v682, 0.0
  %v709 = vmax.f32 %v687, 0.0
  %v710 = vmax.f32 %v692, 0.0
  %v711 = vld [vmem:[%s2 + $0x78] sm:$0xff]
  %v712 = vld [vmem:[%s2 + $0x80] sm:$0xff]
  %v713 = vld [vmem:[%s2 + $0x88] sm:$0xff]
  %v714 = vld [vmem:[%s2 + $0x90] sm:$0xff]
  %v715 = vld [vmem:[%s2 + $0x98] sm:$0xff]
  %v716 = vld [vmem:[%s2 + $0xa0] sm:$0xff]
  %v717 = vld [vmem:[%s2 + $0xa8] sm:$0xff]
  %v718 = vld [vmem:[%s2 + $0xb0] sm:$0xff]
  %v719 = vld [vmem:[%s3 + $0x2] sm:$0x1]
  %v720 = vlaneseq
  %v721 = vshrl.u32 %v720, 7
  %v722 = vsub.s32 0, %v721
  %v723 = vrot.slane %v719, %v722
  %vm724 = vcmask 523264
  %v726 = vsel %vm724, %v695, 0
  %v729 = vsel %vm724, %v696, 0
  %v732 = vsel %vm724, %v697, 0
  %v735 = vsel %vm724, %v698, 0
  %v738 = vsel %vm724, %v699, 0
  %v741 = vsel %vm724, %v700, 0
  %v744 = vsel %vm724, %v701, 0
  %v747 = vsel %vm724, %v702, 0
  %v750 = vsel %vm724, %v703, 0
  %v753 = vsel %vm724, %v704, 0
  %v756 = vsel %vm724, %v705, 0
  %v759 = vsel %vm724, %v706, 0
  %v762 = vsel %vm724, %v707, 0
  %v765 = vsel %vm724, %v708, 0
  %v768 = vsel %vm724, %v709, 0
  %v771 = vsel %vm724, %v710, 0
  %773 = vmatprep.subr.mxu0 0.0
  %774 = vmatpush1.msra.mxu0 %v711
  %775 = vmatprep.subr.mxu0 0.0
  %776 = vmatpush1.msra.mxu0 %v712
  %777 = vmatprep.subr.mxu0 0.0
  %778 = vmatpush1.msra.mxu0 %v713
  %779 = vmatprep.subr.mxu0 0.0
  %780 = vmatpush1.msra.mxu0 %v714
  %781 = vmatprep.subr.mxu0 0.0
  %782 = vmatpush1.msra.mxu0 %v715
  %783 = vmatprep.subr.mxu0 0.0
  %784 = vmatpush1.msra.mxu0 %v716
  %785 = vmatprep.subr.mxu0 0.0
  %786 = vmatpush1.msra.mxu0 %v717
  %787 = vmatprep.subr.mxu0 0.0
  %788 = vmatpush1.msra.mxu0 %v718
  %789 = vmatprep.subr.mxu0 0.0
  %790 = vmatpush1.msra.mxu0 0.0
  %791 = vmatprep.subr.mxu0 0.0
  %792 = vmatpush1.msra.mxu0 0.0
  %793 = vmatprep.subr.mxu0 0.0
  %794 = vmatpush1.msra.mxu0 0.0
  %795 = vmatprep.subr.mxu0 0.0
  %796 = vmatpush1.msra.mxu0 0.0
  %797 = vmatprep.subr.mxu0 0.0
  %798 = vmatpush1.msra.mxu0 0.0
  %799 = vmatprep.subr.mxu0 0.0
  %800 = vmatpush1.msra.mxu0 0.0
  %801 = vmatprep.subr.mxu0 0.0
  %802 = vmatpush1.msra.mxu0 0.0
  %803 = vmatprep.subr.mxu0 0.0
  %804 = vmatpush1.msra.mxu0 0.0
  %805 = vmatprep.subr.mxu0 0.0
  %806 = vmatpush1.msra.mxu0 0.0
  %807 = vmatprep.subr.mxu0 0.0
  %808 = vmatpush1.msra.mxu0 0.0
  %809 = vmatprep.subr.mxu0 0.0
  %810 = vmatpush1.msra.mxu0 0.0
  %811 = vmatprep.subr.mxu0 0.0
  %812 = vmatpush1.msra.mxu0 0.0
  %813 = vmatprep.subr.mxu0 0.0
  %814 = vmatpush1.msra.mxu0 0.0
  %815 = vmatprep.subr.mxu0 0.0
  %816 = vmatpush1.msra.mxu0 0.0
  %817 = vmatprep.subr.mxu0 0.0
  %818 = vmatpush1.msra.mxu0 0.0
  %819 = vmatprep.subr.mxu0 0.0
  %820 = vmatpush1.msra.mxu0 0.0
  %821 = vmatprep.subr.mxu0 0.0
  %822 = vmatpush1.msra.mxu0 0.0
  %823 = vmatprep.subr.mxu0 0.0
  %824 = vmatpush1.msra.mxu0 0.0
  %825 = vmatprep.subr.mxu0 0.0
  %826 = vmatpush1.msra.mxu0 0.0
  %827 = vmatprep.subr.mxu0 0.0
  %828 = vmatpush1.msra.mxu0 0.0
  %829 = vmatprep.subr.mxu0 0.0
  %830 = vmatpush1.msra.mxu0 0.0
  %831 = vmatprep.subr.mxu0 0.0
  %832 = vmatpush1.msra.mxu0 0.0
  %833 = vmatprep.subr.mxu0 0.0
  %834 = vmatpush1.msra.mxu0 0.0
  %835 = vmatprep.subr.mxu0 0.0
  %836 = vmatpush1.msra.mxu0 0.0
  %837 = vmatprep.mubr.f32.mxu0 0.0
  %838 = vmatmul.mubr.f32.gmra.mrb[0].mxu0 %v726
  %v839 = vpop.f32.mrb[0].mxu0
  %v840 = vadd.f32 %v723, %v839
  %v841 = vpop.f32.mrb[0].mxu0
  %842 = vmatprep.mubr.f32.mxu0 0.0
  %843 = vmatmul.mubr.f32.gmra.mrb[0].mxu0 %v729
  %v844 = vpop.f32.mrb[0].mxu0
  %v845 = vadd.f32 %v723, %v844
  %v846 = vpop.f32.mrb[0].mxu0
  %847 = vmatprep.mubr.f32.mxu0 0.0
  %848 = vmatmul.mubr.f32.gmra.mrb[0].mxu0 %v732
  %v849 = vpop.f32.mrb[0].mxu0
  %v850 = vadd.f32 %v723, %v849
  %v851 = vpop.f32.mrb[0].mxu0
  %852 = vmatprep.mubr.f32.mxu0 0.0
  %853 = vmatmul.mubr.f32.gmra.mrb[0].mxu0 %v735
  %v854 = vpop.f32.mrb[0].mxu0
  %v855 = vadd.f32 %v723, %v854
  %v856 = vpop.f32.mrb[0].mxu0
  %857 = vmatprep.mubr.f32.mxu0 0.0
  %858 = vmatmul.mubr.f32.gmra.mrb[0].mxu0 %v738
  %v859 = vpop.f32.mrb[0].mxu0
  %v860 = vadd.f32 %v723, %v859
  %v861 = vpop.f32.mrb[0].mxu0
  %862 = vmatprep.mubr.f32.mxu0 0.0
  %863 = vmatmul.mubr.f32.gmra.mrb[0].mxu0 %v741
  %v864 = vpop.f32.mrb[0].mxu0
  %v865 = vadd.f32 %v723, %v864
  %v866 = vpop.f32.mrb[0].mxu0
  %867 = vmatprep.mubr.f32.mxu0 0.0
  %868 = vmatmul.mubr.f32.gmra.mrb[0].mxu0 %v744
  %v869 = vpop.f32.mrb[0].mxu0
  %v870 = vadd.f32 %v723, %v869
  %v871 = vpop.f32.mrb[0].mxu0
  %872 = vmatprep.mubr.f32.mxu0 0.0
  %873 = vmatmul.mubr.f32.gmra.mrb[0].mxu0 %v747
  %v874 = vpop.f32.mrb[0].mxu0
  %v875 = vadd.f32 %v723, %v874
  %v876 = vpop.f32.mrb[0].mxu0
  %877 = vmatprep.mubr.f32.mxu0 0.0
  %878 = vmatmul.mubr.f32.gmra.mrb[0].mxu0 %v750
  %v879 = vpop.f32.mrb[0].mxu0
  %v880 = vadd.f32 %v723, %v879
  %v881 = vpop.f32.mrb[0].mxu0
  %882 = vmatprep.mubr.f32.mxu0 0.0
  %883 = vmatmul.mubr.f32.gmra.mrb[0].mxu0 %v753
  %v884 = vpop.f32.mrb[0].mxu0
  %v885 = vadd.f32 %v723, %v884
  %v886 = vpop.f32.mrb[0].mxu0
  %887 = vmatprep.mubr.f32.mxu0 0.0
  %888 = vmatmul.mubr.f32.gmra.mrb[0].mxu0 %v756
  %v889 = vpop.f32.mrb[0].mxu0
  %v890 = vadd.f32 %v723, %v889
  %v891 = vpop.f32.mrb[0].mxu0
  %892 = vmatprep.mubr.f32.mxu0 0.0
  %893 = vmatmul.mubr.f32.gmra.mrb[0].mxu0 %v759
  %v894 = vpop.f32.mrb[0].mxu0
  %v895 = vadd.f32 %v723, %v894
  %v896 = vpop.f32.mrb[0].mxu0
  %897 = vmatprep.mubr.f32.mxu0 0.0
  %898 = vmatmul.mubr.f32.gmra.mrb[0].mxu0 %v762
  %v899 = vpop.f32.mrb[0].mxu0
  %v900 = vadd.f32 %v723, %v899
  %v901 = vpop.f32.mrb[0].mxu0
  %902 = vmatprep.mubr.f32.mxu0 0.0
  %903 = vmatmul.mubr.f32.gmra.mrb[0].mxu0 %v765
  %v904 = vpop.f32.mrb[0].mxu0
  %v905 = vadd.f32 %v723, %v904
  %v906 = vpop.f32.mrb[0].mxu0
  %907 = vmatprep.mubr.f32.mxu0 0.0
  %908 = vmatmul.mubr.f32.gmra.mrb[0].mxu0 %v768
  %v909 = vpop.f32.mrb[0].mxu0
  %v910 = vadd.f32 %v723, %v909
  %v911 = vpop.f32.mrb[0].mxu0
  %912 = vmatprep.mubr.f32.mxu0 0.0
  %913 = vmatmul.mubr.f32.gmra.mrb[0].mxu0 %v771
  %v914 = vpop.f32.mrb[0].mxu0
  %v915 = vadd.f32 %v723, %v914
  %v916 = vpop.f32.mrb[0].mxu0
  %917 = vdwg.mxu0
  %v918 = vmax.f32 %v840, 0.0
  %v919 = vmax.f32 %v845, 0.0
  %v920 = vmax.f32 %v850, 0.0
  %v921 = vmax.f32 %v855, 0.0
  %v922 = vmax.f32 %v860, 0.0
  %v923 = vmax.f32 %v865, 0.0
  %v924 = vmax.f32 %v870, 0.0
  %v925 = vmax.f32 %v875, 0.0
  %v926 = vmax.f32 %v880, 0.0
  %v927 = vmax.f32 %v885, 0.0
  %v928 = vmax.f32 %v890, 0.0
  %v929 = vmax.f32 %v895, 0.0
  %v930 = vmax.f32 %v900, 0.0
  %v931 = vmax.f32 %v905, 0.0
  %v932 = vmax.f32 %v910, 0.0
  %v933 = vmax.f32 %v915, 0.0
  %v934 = vld [vmem:[%s2 + $0xb8] sm:$0xff]
  %v936 = vsel %vm724, %v934, 0
  %v939 = vsel %vm724, %v918, 0
  %v942 = vsel %vm724, %v919, 0
  %v945 = vsel %vm724, %v920, 0
  %v948 = vsel %vm724, %v921, 0
  %v951 = vsel %vm724, %v922, 0
  %v954 = vsel %vm724, %v923, 0
  %v957 = vsel %vm724, %v924, 0
  %v960 = vsel %vm724, %v925, 0
  %v963 = vsel %vm724, %v926, 0
  %v966 = vsel %vm724, %v927, 0
  %v969 = vsel %vm724, %v928, 0
  %v972 = vsel %vm724, %v929, 0
  %v975 = vsel %vm724, %v930, 0
  %v978 = vsel %vm724, %v931, 0
  %v981 = vsel %vm724, %v932, 0
  %v984 = vsel %vm724, %v933, 0
  %986 = vmatprep.subr.mxu0 0.0
  %987 = vmatpush1.xpose.msra.mxu0 %v939
  %988 = vmatprep.subr.mxu0 0.0
  %989 = vmatpush1.xpose.msra.mxu0 %v942
  %990 = vmatprep.subr.mxu0 0.0
  %991 = vmatpush1.xpose.msra.mxu0 %v945
  %992 = vmatprep.subr.mxu0 0.0
  %993 = vmatpush1.xpose.msra.mxu0 %v948
  %994 = vmatprep.subr.mxu0 0.0
  %995 = vmatpush1.xpose.msra.mxu0 %v951
  %996 = vmatprep.subr.mxu0 0.0
  %997 = vmatpush1.xpose.msra.mxu0 %v954
  %998 = vmatprep.subr.mxu0 0.0
  %999 = vmatpush1.xpose.msra.mxu0 %v957
  %1000 = vmatprep.subr.mxu0 0.0
  %1001 = vmatpush1.xpose.msra.mxu0 %v960
  %1002 = vmatprep.subr.mxu0 0.0
  %1003 = vmatpush1.xpose.msra.mxu0 %v963
  %1004 = vmatprep.subr.mxu0 0.0
  %1005 = vmatpush1.xpose.msra.mxu0 %v966
  %1006 = vmatprep.subr.mxu0 0.0
  %1007 = vmatpush1.xpose.msra.mxu0 %v969
  %1008 = vmatprep.subr.mxu0 0.0
  %1009 = vmatpush1.xpose.msra.mxu0 %v972
  %1010 = vmatprep.subr.mxu0 0.0
  %1011 = vmatpush1.xpose.msra.mxu0 %v975
  %1012 = vmatprep.subr.mxu0 0.0
  %1013 = vmatpush1.xpose.msra.mxu0 %v978
  %1014 = vmatprep.subr.mxu0 0.0
  %1015 = vmatpush1.xpose.msra.mxu0 %v981
  %1016 = vmatprep.subr.mxu0 0.0
  %1017 = vmatpush1.xpose.msra.mxu0 %v984
  %1018 = vmatprep.subr.mxu0 0.0
  %1019 = vmatpush1.xpose.msra.mxu0 0.0
  %1020 = vmatprep.subr.mxu0 0.0
  %1021 = vmatpush1.xpose.msra.mxu0 0.0
  %1022 = vmatprep.subr.mxu0 0.0
  %1023 = vmatpush1.xpose.msra.mxu0 0.0
  %1024 = vmatprep.subr.mxu0 0.0
  %1025 = vmatpush1.xpose.msra.mxu0 0.0
  %1026 = vmatprep.subr.mxu0 0.0
  %1027 = vmatpush1.xpose.msra.mxu0 0.0
  %1028 = vmatprep.subr.mxu0 0.0
  %1029 = vmatpush1.xpose.msra.mxu0 0.0
  %1030 = vmatprep.subr.mxu0 0.0
  %1031 = vmatpush1.xpose.msra.mxu0 0.0
  %1032 = vmatprep.subr.mxu0 0.0
  %1033 = vmatpush1.xpose.msra.mxu0 0.0
  %1034 = vmatprep.subr.mxu0 0.0
  %1035 = vmatpush1.xpose.msra.mxu0 0.0
  %1036 = vmatprep.subr.mxu0 0.0
  %1037 = vmatpush1.xpose.msra.mxu0 0.0
  %1038 = vmatprep.subr.mxu0 0.0
  %1039 = vmatpush1.xpose.msra.mxu0 0.0
  %1040 = vmatprep.subr.mxu0 0.0
  %1041 = vmatpush1.xpose.msra.mxu0 0.0
  %1042 = vmatprep.subr.mxu0 0.0
  %1043 = vmatpush1.xpose.msra.mxu0 0.0
  %1044 = vmatprep.subr.mxu0 0.0
  %1045 = vmatpush1.xpose.msra.mxu0 0.0
  %1046 = vmatprep.subr.mxu0 0.0
  %1047 = vmatpush1.xpose.msra.mxu0 0.0
  %1048 = vmatprep.subr.mxu0 0.0
  %1049 = vmatpush1.xpose.msra.mxu0 0.0
  %1050 = vmatprep.mubr.f32.mxu0 0.0
  %1051 = vmatmul.mubr.f32.gmra.mrb[0].mxu0 %v936
  %v1052 = vpop.f32.mrb[0].mxu0
  %v1053 = vadd.f32 0.0, %v1052
  %v1054 = vpop.f32.mrb[0].mxu0
  %1055 = vdwg.mxu0
  %v1056 = vld [vmem:[%s3 + $0x3] sm:$0x1]
  %1058 = vset.pattern.permute.xlu0 0
  %1059 = vperm.xlu0 %1058, %v1056
  %v1060 = vpop.permute.xlu0 %1059
  %v1062 = vadd.f32 %v1053, %v1060
  %1063 = vst [vmem:[%s4] sm:$0x1] %v1062
  // Predicated region
  $region18: #{critic_forward.1} parent=0 // pred_check
    _
  $region19: #{critic_forward.1} parent=0 // pred_check_branch
    %1065 = sbr.rel (0) target = $region21
  $region20: #{critic_forward.1} parent=0 // pred_region
    _
  $region21: #{critic_forward.1} parent=0 // pred_fallthru
    _
  // Predicated region
  $region22: #{critic_forward.1} parent=0 // pred_check
    _
  $region23: #{critic_forward.1} parent=0 // pred_check_branch
    %1067 = sbr.rel (0) target = $region25
  $region24: #{critic_forward.1} parent=0 // pred_region
    _
  $region25: #{critic_forward.1} parent=0 // pred_fallthru
    _

</llo_original>
